<compile_context>
chip_gen: v7x
topology: tpu7x:2x2x1
jax: 0.10.0
libtpu: 0.0.40
codegen_flags: <defaults>
</compile_context>

<pallas_src>
import jax
import jax.numpy as jnp
from jax.experimental import pallas as pl
from jax.experimental.pallas import tpu as pltpu

NUM_INPUTS = 11
NUM_OUTPUTS = 4
HIDDEN = 32
FUSED_H = 2 * HIDDEN          # 64: [critic hidden | actor hidden]
OUT_W = 8                     # output slab rows: 0:4 probs, 4 value, 5:8 pad
LANE = 128


def actor_critic_kernel(x_ref, w1_ref, b1_ref, w2_ref, b2_ref, out_ref):
    x = x_ref[...]                                                    # [11, TB]

    # Fused first layer (one MXU push): [64, 11] @ [11, TB] -> [64, TB]
    h = jnp.dot(w1_ref[...], x, preferred_element_type=jnp.float32) + b1_ref[...]
    h = jnp.maximum(h, 0.0)

    # Fused block-structured second layer: [8, 64] @ [64, TB] -> [8, TB]
    #   rows 0:4 = actor logits, row 4 = critic value, rows 5:8 = 0
    z = jnp.dot(w2_ref[...], h, preferred_element_type=jnp.float32) + b2_ref[...]

    # Mask-based softmax over the sublane (row) axis — no lane slicing, no
    # concatenate; everything stays on the full [8, TB] slab.
    row = jax.lax.broadcasted_iota(jnp.int32, z.shape, 0)             # [8, TB]
    is_logit = row < NUM_OUTPUTS
    is_value = row == NUM_OUTPUTS

    zl = jnp.where(is_logit, z, -jnp.inf)                             # mask non-logit rows
    m = jnp.max(zl, axis=0, keepdims=True)                            # [1, TB]
    e = jnp.exp(zl - m)                                               # masked rows -> 0
    s = jnp.sum(e, axis=0, keepdims=True)                             # [1, TB]
    probs_full = e / s                                                # exact division

    # rows 0:3 probs, row 4 raw value, rows 5:7 exactly 0 — single dense store.
    out_ref[...] = jnp.where(is_value, z, probs_full).astype(out_ref.dtype)


def fuse_params(p):
    """Fused, pre-transposed parameters for the batch-on-lanes formulation."""
    # First layer: [64, 11], rows 0:32 critic hidden, rows 32:64 actor hidden.
    w1t = jnp.concatenate([p["w1c"].T, p["w1a"].T], axis=0)           # [64, 11]
    b1t = jnp.concatenate([p["b1c"].T, p["b1a"].T], axis=0)           # [64, 1]

    # Second layer: [8, 64] block structure (zeros contribute exactly 0).
    w2t = jnp.zeros((OUT_W, FUSED_H), jnp.float32)
    w2t = w2t.at[0:NUM_OUTPUTS, HIDDEN:].set(p["w2a"].T)              # logits <- actor hidden
    w2t = w2t.at[NUM_OUTPUTS:NUM_OUTPUTS + 1, :HIDDEN].set(p["w2c"].T)  # value <- critic hidden

    b2t = jnp.zeros((OUT_W, 1), jnp.float32)
    b2t = b2t.at[0:NUM_OUTPUTS, 0].set(p["b2a"][0])
    b2t = b2t.at[NUM_OUTPUTS, 0].set(p["b2c"][0, 0])
    return w1t, b1t, w2t, b2t


def _round_up(a, m):
    return (a + m - 1) // m * m


def actor_critic_forward(x, params, *, tb=2048):
    """x: [B, NUM_INPUTS] float32 -> (probs [B, 4], value [B, 1])."""
    B = x.shape[0]
    w1t, b1t, w2t, b2t = fuse_params(params)

    # Batch tile lives on the lane axis: it must be a multiple of 128 unless
    # the block spans the full batch extent.  Tiny batches -> single full tile
    # (no padding); large batches -> >=2 grid steps so v7x can shard across
    # its 2 TensorCores ("parallel" is harmless on 1-TC v5e/v6e).
    if B <= 2 * LANE:
        TB = B
        B_pad = B
    else:
        TB = min(_round_up(tb, LANE), max(LANE, _round_up(B // 2, LANE)))
        B_pad = _round_up(B, TB)

    # Transposed (lane-dense) input.  In production, produce x already as
    # [NUM_INPUTS, B] upstream to avoid this host-side transpose/pad copy.
    x_t = x.T                                                         # [11, B]
    if B_pad != B:
        x_t = jnp.pad(x_t, ((0, 0), (0, B_pad - B)))

    grid = (B_pad // TB,)

    flops = 2 * B_pad * (NUM_INPUTS * FUSED_H + FUSED_H * OUT_W)
    bytes_accessed = 4 * (
        B_pad * NUM_INPUTS + B_pad * OUT_W
        + FUSED_H * NUM_INPUTS + FUSED_H + OUT_W * FUSED_H + OUT_W
    )

    out = pl.pallas_call(
        actor_critic_kernel,
        out_shape=jax.ShapeDtypeStruct((OUT_W, B_pad), jnp.float32),
        grid_spec=pltpu.PrefetchScalarGridSpec(
            num_scalar_prefetch=0,
            grid=grid,
            in_specs=[
                pl.BlockSpec((NUM_INPUTS, TB), lambda i: (0, i)),     # x^T: tiled on lanes
                pl.BlockSpec((FUSED_H, NUM_INPUTS), lambda i: (0, 0)),  # W1^T: VMEM-resident
                pl.BlockSpec((FUSED_H, 1), lambda i: (0, 0)),         # b1^T
                pl.BlockSpec((OUT_W, FUSED_H), lambda i: (0, 0)),     # W2^T (block structure)
                pl.BlockSpec((OUT_W, 1), lambda i: (0, 0)),           # b2^T
            ],
            out_specs=pl.BlockSpec((OUT_W, TB), lambda i: (0, i)),    # lane-dense output slab
        ),
        compiler_params=pltpu.CompilerParams(
            dimension_semantics=("parallel",),     # shard batch across TCs on v7x
            vmem_limit_bytes=32 * 1024 * 1024,     # safe on v5e/v6e/v7x alike
        ),
        cost_estimate=pl.CostEstimate(
            flops=flops,
            transcendentals=B_pad * OUT_W,
            bytes_accessed=bytes_accessed,
        ),
    )(x_t, w1t, b1t, w2t, b2t)

    probs = out[:NUM_OUTPUTS, :B].T                                   # [B, 4]
    value = out[NUM_OUTPUTS:NUM_OUTPUTS + 1, :B].T                    # [B, 1]
    # TODO(synk): torch.distributions.Categorical has no tensor equivalent; we
    # return the probabilities that parameterize it (plus the critic value).
    return probs, value


def init_params(key):
    """PyTorch nn.Linear-style init (U[-1/sqrt(fan_in), +1/sqrt(fan_in)]).
    Weights stored as [in_features, out_features] (transpose of PyTorch layout)."""
    ks = jax.random.split(key, 8)

    def lin(kw, kb, fan_in, fan_out):
        bound = 1.0 / jnp.sqrt(jnp.float32(fan_in))
        w = jax.random.uniform(kw, (fan_in, fan_out), jnp.float32, -bound, bound)
        b = jax.random.uniform(kb, (1, fan_out), jnp.float32, -bound, bound)
        return w, b

    w1c, b1c = lin(ks[0], ks[1], NUM_INPUTS, HIDDEN)
    w2c, b2c = lin(ks[2], ks[3], HIDDEN, 1)
    w1a, b1a = lin(ks[4], ks[5], NUM_INPUTS, HIDDEN)
    w2a, b2a = lin(ks[6], ks[7], HIDDEN, NUM_OUTPUTS)
    return dict(w1c=w1c, b1c=b1c, w2c=w2c, b2c=b2c,
                w1a=w1a, b1a=b1a, w2a=w2a, b2a=b2a)


def reference_forward(x, p):
    hc = jnp.maximum(x @ p["w1c"] + p["b1c"], 0.0)
    value = hc @ p["w2c"] + p["b2c"]
    ha = jnp.maximum(x @ p["w1a"] + p["b1a"], 0.0)
    logits = ha @ p["w2a"] + p["b2a"]
    probs = jax.nn.softmax(logits, axis=-1)
    return probs, value


if __name__ == "__main__":
    key = jax.random.PRNGKey(0)
    k_params, k_x = jax.random.split(key)

    B = 8
    x = jax.random.normal(k_x, (B, NUM_INPUTS), jnp.float32)
    params = init_params(k_params)

    probs, value = actor_critic_forward(x, params)
    probs = jax.block_until_ready(probs)
    value = jax.block_until_ready(value)

    # correctness check against pure-JAX reference
    ref_probs, ref_value = reference_forward(x, params)
    assert probs.shape == (B, NUM_OUTPUTS) and value.shape == (B, 1)
    # value path: fused block-structured matmul adds exact zeros -> f32-exact
    assert jnp.allclose(value, ref_value, atol=1e-5, rtol=1e-5)
    # probs: exact division (no approx reciprocal) -> tight tolerance
    assert jnp.allclose(probs, ref_probs, atol=1e-5, rtol=1e-5)
    assert jnp.allclose(jnp.sum(probs, axis=-1), 1.0, atol=1e-5)

    print("KERNEL_OK")
</pallas_src>

<mosaic_0001>
module attributes {stable_mosaic.version = 11 : i64} {
  func.func @actor_critic_kernel(%arg0: i32, %arg1: memref<11x8xf32, #tpu.memory_space<vmem>>, %arg2: memref<64x11xf32, #tpu.memory_space<vmem>>, %arg3: memref<64x1xf32, #tpu.memory_space<vmem>>, %arg4: memref<8x64xf32, #tpu.memory_space<vmem>>, %arg5: memref<8x1xf32, #tpu.memory_space<vmem>>, %arg6: memref<8x8xf32, #tpu.memory_space<vmem>>) attributes {dimension_semantics = [#tpu.dimension_semantics<parallel>], iteration_bounds = array<i64: 1>, scalar_prefetch = 0 : i64, scratch_operands = 0 : i64, tpu.core_type = #tpu.core_type<tc>, window_params = [{transform_indices = @transform_0, window_bounds = array<i64: 11, 8>}, {pipeline_mode = #tpu.pipeline_mode<synchronous>, transform_indices = @transform_1, window_bounds = array<i64: 64, 11>}, {pipeline_mode = #tpu.pipeline_mode<synchronous>, transform_indices = @transform_2, window_bounds = array<i64: 64, 1>}, {pipeline_mode = #tpu.pipeline_mode<synchronous>, transform_indices = @transform_3, window_bounds = array<i64: 8, 64>}, {pipeline_mode = #tpu.pipeline_mode<synchronous>, transform_indices = @transform_4, window_bounds = array<i64: 8, 1>}, {transform_indices = @transform_5, window_bounds = array<i64: 8, 8>}]} {
    %c0 = arith.constant 0 : index
    %c0_0 = arith.constant 0 : index
    %0 = vector.load %arg1[%c0, %c0_0] : memref<11x8xf32, #tpu.memory_space<vmem>>, vector<11x8xf32>
    %c0_1 = arith.constant 0 : index
    %c0_2 = arith.constant 0 : index
    %1 = vector.load %arg2[%c0_1, %c0_2] : memref<64x11xf32, #tpu.memory_space<vmem>>, vector<64x11xf32>
    %cst = arith.constant dense<0.000000e+00> : vector<64x8xf32>
    %2 = tpu.matmul %1, %0, %cst {dimension_numbers = #tpu.dot_dimension_numbers<[1], [0], [0], [1], [0, 0, 1, 1], [], []>} : vector<64x11xf32>, vector<11x8xf32>, vector<64x8xf32> -> vector<64x8xf32>
    %c0_3 = arith.constant 0 : index
    %c0_4 = arith.constant 0 : index
    %3 = vector.load %arg3[%c0_3, %c0_4] : memref<64x1xf32, #tpu.memory_space<vmem>>, vector<64x1xf32>
    %4 = vector.broadcast %3 : vector<64x1xf32> to vector<64x8xf32>
    %5 = arith.addf %2, %4 : vector<64x8xf32>
    %cst_5 = arith.constant 0.000000e+00 : f32
    %6 = vector.broadcast %cst_5 : f32 to vector<64x8xf32>
    %7 = arith.maximumf %5, %6 : vector<64x8xf32>
    %c0_6 = arith.constant 0 : index
    %c0_7 = arith.constant 0 : index
    %8 = vector.load %arg4[%c0_6, %c0_7] : memref<8x64xf32, #tpu.memory_space<vmem>>, vector<8x64xf32>
    %cst_8 = arith.constant dense<0.000000e+00> : vector<8x8xf32>
    %9 = tpu.matmul %8, %7, %cst_8 {dimension_numbers = #tpu.dot_dimension_numbers<[1], [0], [0], [1], [0, 0, 1, 1], [], []>} : vector<8x64xf32>, vector<64x8xf32>, vector<8x8xf32> -> vector<8x8xf32>
    %c0_9 = arith.constant 0 : index
    %c0_10 = arith.constant 0 : index
    %10 = vector.load %arg5[%c0_9, %c0_10] : memref<8x1xf32, #tpu.memory_space<vmem>>, vector<8x1xf32>
    %11 = vector.broadcast %10 : vector<8x1xf32> to vector<8x8xf32>
    %12 = arith.addf %9, %11 : vector<8x8xf32>
    %13 = tpu.iota {dimensions = array<i32: 0>} : vector<8x8xi32>
    %c4_i32 = arith.constant 4 : i32
    %14 = vector.broadcast %c4_i32 : i32 to vector<8x8xi32>
    %15 = arith.cmpi slt, %13, %14 : vector<8x8xi32>
    %c4_i32_11 = arith.constant 4 : i32
    %16 = vector.broadcast %c4_i32_11 : i32 to vector<8x8xi32>
    %17 = arith.cmpi eq, %13, %16 : vector<8x8xi32>
    %cst_12 = arith.constant 0xFF800000 : f32
    %18 = vector.broadcast %cst_12 : f32 to vector<8x8xf32>
    %19 = arith.select %15, %12, %18 : vector<8x8xi1>, vector<8x8xf32>
    %cst_13 = arith.constant dense<0xFF800000> : vector<8xf32>
    %20 = vector.multi_reduction <maximumf>, %19, %cst_13 [0] : vector<8x8xf32> to vector<8xf32>
    %21 = vector.shape_cast %20 : vector<8xf32> to vector<1x8xf32>
    %22 = vector.broadcast %21 : vector<1x8xf32> to vector<8x8xf32>
    %23 = arith.subf %19, %22 : vector<8x8xf32>
    %24 = math.exp %23 : vector<8x8xf32>
    %cst_14 = arith.constant dense<0.000000e+00> : vector<8xf32>
    %25 = vector.multi_reduction <add>, %24, %cst_14 [0] : vector<8x8xf32> to vector<8xf32>
    %26 = vector.shape_cast %25 : vector<8xf32> to vector<1x8xf32>
    %27 = vector.broadcast %26 : vector<1x8xf32> to vector<8x8xf32>
    %28 = arith.divf %24, %27 : vector<8x8xf32>
    %29 = arith.select %17, %12, %28 : vector<8x8xi1>, vector<8x8xf32>
    %c0_15 = arith.constant 0 : index
    %c0_16 = arith.constant 0 : index
    %30 = vector.load %arg6[%c0_15, %c0_16] : memref<8x8xf32, #tpu.memory_space<vmem>>, vector<8x8xf32>
    tpu.vector_store %arg6[%c0_15, %c0_16], %29 {strides = array<i32>} : memref<8x8xf32, #tpu.memory_space<vmem>>, vector<8x8xf32>,
    return
  }
  func.func @transform_0(%arg0: i32) -> (i32, i32) {
    %c0_i32 = arith.constant 0 : i32
    %c0_i32_0 = arith.constant 0 : i32
    return %c0_i32, %arg0 : i32, i32
  }
  func.func @transform_1(%arg0: i32) -> (i32, i32) {
    %c0_i32 = arith.constant 0 : i32
    %c0_i32_0 = arith.constant 0 : i32
    %c0_i32_1 = arith.constant 0 : i32
    return %c0_i32, %c0_i32_0 : i32, i32
  }
  func.func @transform_2(%arg0: i32) -> (i32, i32) {
    %c0_i32 = arith.constant 0 : i32
    %c0_i32_0 = arith.constant 0 : i32
    %c0_i32_1 = arith.constant 0 : i32
    return %c0_i32, %c0_i32_0 : i32, i32
  }
  func.func @transform_3(%arg0: i32) -> (i32, i32) {
    %c0_i32 = arith.constant 0 : i32
    %c0_i32_0 = arith.constant 0 : i32
    %c0_i32_1 = arith.constant 0 : i32
    return %c0_i32, %c0_i32_0 : i32, i32
  }
  func.func @transform_4(%arg0: i32) -> (i32, i32) {
    %c0_i32 = arith.constant 0 : i32
    %c0_i32_0 = arith.constant 0 : i32
    %c0_i32_1 = arith.constant 0 : i32
    return %c0_i32, %c0_i32_0 : i32, i32
  }
  func.func @transform_5(%arg0: i32) -> (i32, i32) {
    %c0_i32 = arith.constant 0 : i32
    %c0_i32_0 = arith.constant 0 : i32
    return %c0_i32, %arg0 : i32, i32
  }
}

</mosaic_0001>

<llo_original>
// kernel: tpu_custom_call.1
$region0: #{tpu_custom_call.1}
  #allocation0 [shape = 'u32[]', space=smem, size = 0x4, offset = 0x4, fixed_abs, tag = 'smem constant byte address 0x4 - core index']
  #allocation1 [shape = 'u32[144,128]{1,0:T(1,128)}', space=vmem, size = 0x12000, scoped, tag = 'internal scratch']
  %s0 = inlined_call_operand.vmem [shape: f32[11,8], index: 0, kind: input, shape index: {}]
  %s1 = inlined_call_operand.vmem [shape: f32[64,11], index: 1, kind: input, shape index: {}]
  %s2 = inlined_call_operand.vmem [shape: f32[64,1], index: 2, kind: input, shape index: {}]
  %s3 = inlined_call_operand.vmem [shape: f32[8,64], index: 3, kind: input, shape index: {}]
  %s4 = inlined_call_operand.vmem [shape: f32[8,1], index: 4, kind: input, shape index: {}]
  %s5 = inlined_call_operand.hbm [shape: f32[8,8], index: 5, kind: output, shape index: {}]
  %s6 = sld [smem:[#allocation0]]
  $region30: #{tpu_custom_call.1} parent=0
    _
  %s8 = ssub.s32 1, %s6
  %s9 = scalar_select 0, %s8, %s6
  $region1: #{tpu_custom_call.1} parent=0
    #allocation2 [shape = 'u8[4096]{0}', space=vmem, size = 0x1000, scoped, tag = 'output window, operand 0, single buffered']
    #allocation3 [shape = 's32[1]{0}', space=sflag, size = 0x4, scoped, tag = 'scoped memory for tpu_custom_call.1']
    %10 = vsyncpa [#allocation3], 0
    // Predicated region
    $region2: #{tpu_custom_call.1} parent=1 // pred_check
      _
    $region3: #{tpu_custom_call.1} parent=1 // pred_check_branch
      %12 = sbr.rel (0) target = $region5
    $region4: #{tpu_custom_call.1} parent=1 // pred_region
      _
    $region5: #{tpu_custom_call.1} parent=1 // pred_fallthru
      _
    // Predicated region
    $region6: #{tpu_custom_call.1} parent=1 // pred_check
      _
    $region7: #{tpu_custom_call.1} parent=1 // pred_check_branch
      %14 = sbr.rel (0) target = $region9
    $region8: #{tpu_custom_call.1} parent=1 // pred_region
      _
    $region9: #{tpu_custom_call.1} parent=1 // pred_fallthru
      _
    // Predicated region
    $region10: #{tpu_custom_call.1} parent=1 // pred_check
      _
    $region11: #{tpu_custom_call.1} parent=1 // pred_check_branch
      %16 = sbr.rel (0) target = $region13
    $region12: #{tpu_custom_call.1} parent=1 // pred_region
      _
    $region13: #{tpu_custom_call.1} parent=1 // pred_fallthru
      _
    // Predicated region
    $region14: #{tpu_custom_call.1} parent=1 // pred_check
      _
    $region15: #{tpu_custom_call.1} parent=1 // pred_check_branch
      %18 = sbr.rel (0) target = $region17
    $region16: #{tpu_custom_call.1} parent=1 // pred_region
      _
    $region17: #{tpu_custom_call.1} parent=1 // pred_fallthru
      _
    // Predicated region
    $region18: #{tpu_custom_call.1} parent=1 // pred_check
      _
    $region19: #{tpu_custom_call.1} parent=1 // pred_check_branch
      %20 = sbr.rel (0) target = $region21
    $region20: #{tpu_custom_call.1} parent=1 // pred_region
      _
    $region21: #{tpu_custom_call.1} parent=1 // pred_fallthru
      _
    %v21 = vld [vmem:[%s0] sm:$0xff]
    %v22 = vld [vmem:[%s0 + $0x8] sm:$0x7]
    %v23 = vld [vmem:[%s1] sm:$0xff]
    %v24 = vld [vmem:[%s1 + $0x8] sm:$0xff]
    %v25 = vld [vmem:[%s1 + $0x10] sm:$0xff]
    %v26 = vld [vmem:[%s1 + $0x18] sm:$0xff]
    %v27 = vld [vmem:[%s1 + $0x20] sm:$0xff]
    %v28 = vld [vmem:[%s1 + $0x28] sm:$0xff]
    %v29 = vld [vmem:[%s1 + $0x30] sm:$0xff]
    %v30 = vld [vmem:[%s1 + $0x38] sm:$0xff]
    %v31 = vld [vmem:[%s2] sm:$0xff]
    %v32 = vld [vmem:[%s2 + $0x8] sm:$0xff]
    %v33 = vld [vmem:[%s2 + $0x10] sm:$0xff]
    %v34 = vld [vmem:[%s2 + $0x18] sm:$0xff]
    %v35 = vld [vmem:[%s2 + $0x20] sm:$0xff]
    %v36 = vld [vmem:[%s2 + $0x28] sm:$0xff]
    %v37 = vld [vmem:[%s2 + $0x30] sm:$0xff]
    %v38 = vld [vmem:[%s2 + $0x38] sm:$0xff]
    %40 = vset.pattern.permute.xlu0 0
    %41 = vperm.xlu0 %40, %v31
    %v42 = vpop.permute.xlu0 %41
    %45 = vset.pattern.permute.xlu0 0
    %46 = vperm.xlu0 %45, %v32
    %v47 = vpop.permute.xlu0 %46
    %50 = vset.pattern.permute.xlu0 0
    %51 = vperm.xlu0 %50, %v33
    %v52 = vpop.permute.xlu0 %51
    %55 = vset.pattern.permute.xlu0 0
    %56 = vperm.xlu0 %55, %v34
    %v57 = vpop.permute.xlu0 %56
    %60 = vset.pattern.permute.xlu0 0
    %61 = vperm.xlu0 %60, %v35
    %v62 = vpop.permute.xlu0 %61
    %65 = vset.pattern.permute.xlu0 0
    %66 = vperm.xlu0 %65, %v36
    %v67 = vpop.permute.xlu0 %66
    %70 = vset.pattern.permute.xlu0 0
    %71 = vperm.xlu0 %70, %v37
    %v72 = vpop.permute.xlu0 %71
    %75 = vset.pattern.permute.xlu0 0
    %76 = vperm.xlu0 %75, %v38
    %v77 = vpop.permute.xlu0 %76
    %vm79 = vcmask 89088
    %v81 = vsel %vm79, %v23, 0
    %v84 = vsel %vm79, %v24, 0
    %v87 = vsel %vm79, %v25, 0
    %v90 = vsel %vm79, %v26, 0
    %v93 = vsel %vm79, %v27, 0
    %v96 = vsel %vm79, %v28, 0
    %v99 = vsel %vm79, %v29, 0
    %v102 = vsel %vm79, %v30, 0
    %vm104 = vcmask 1042432
    %v106 = vsel %vm104, %v22, 0
    %108 = vmatprep.subr.mxu0 0.0
    %109 = vmatpush1.msra.mxu0 %v21
    %110 = vmatprep.subr.mxu0 0.0
    %111 = vmatpush1.msra.mxu0 %v106
    %112 = vmatprep.subr.mxu0 0.0
    %113 = vmatpush1.msra.mxu0 0.0
    %114 = vmatprep.subr.mxu0 0.0
    %115 = vmatpush1.msra.mxu0 0.0
    %116 = vmatprep.subr.mxu0 0.0
    %117 = vmatpush1.msra.mxu0 0.0
    %118 = vmatprep.subr.mxu0 0.0
    %119 = vmatpush1.msra.mxu0 0.0
    %120 = vmatprep.subr.mxu0 0.0
    %121 = vmatpush1.msra.mxu0 0.0
    %122 = vmatprep.subr.mxu0 0.0
    %123 = vmatpush1.msra.mxu0 0.0
    %124 = vmatprep.subr.mxu0 0.0
    %125 = vmatpush1.msra.mxu0 0.0
    %126 = vmatprep.subr.mxu0 0.0
    %127 = vmatpush1.msra.mxu0 0.0
    %128 = vmatprep.subr.mxu0 0.0
    %129 = vmatpush1.msra.mxu0 0.0
    %130 = vmatprep.subr.mxu0 0.0
    %131 = vmatpush1.msra.mxu0 0.0
    %132 = vmatprep.subr.mxu0 0.0
    %133 = vmatpush1.msra.mxu0 0.0
    %134 = vmatprep.subr.mxu0 0.0
    %135 = vmatpush1.msra.mxu0 0.0
    %136 = vmatprep.subr.mxu0 0.0
    %137 = vmatpush1.msra.mxu0 0.0
    %138 = vmatprep.subr.mxu0 0.0
    %139 = vmatpush1.msra.mxu0 0.0
    %140 = vmatprep.subr.mxu0 0.0
    %141 = vmatpush1.msra.mxu0 0.0
    %142 = vmatprep.subr.mxu0 0.0
    %143 = vmatpush1.msra.mxu0 0.0
    %144 = vmatprep.subr.mxu0 0.0
    %145 = vmatpush1.msra.mxu0 0.0
    %146 = vmatprep.subr.mxu0 0.0
    %147 = vmatpush1.msra.mxu0 0.0
    %148 = vmatprep.subr.mxu0 0.0
    %149 = vmatpush1.msra.mxu0 0.0
    %150 = vmatprep.subr.mxu0 0.0
    %151 = vmatpush1.msra.mxu0 0.0
    %152 = vmatprep.subr.mxu0 0.0
    %153 = vmatpush1.msra.mxu0 0.0
    %154 = vmatprep.subr.mxu0 0.0
    %155 = vmatpush1.msra.mxu0 0.0
    %156 = vmatprep.subr.mxu0 0.0
    %157 = vmatpush1.msra.mxu0 0.0
    %158 = vmatprep.subr.mxu0 0.0
    %159 = vmatpush1.msra.mxu0 0.0
    %160 = vmatprep.subr.mxu0 0.0
    %161 = vmatpush1.msra.mxu0 0.0
    %162 = vmatprep.subr.mxu0 0.0
    %163 = vmatpush1.msra.mxu0 0.0
    %164 = vmatprep.subr.mxu0 0.0
    %165 = vmatpush1.msra.mxu0 0.0
    %166 = vmatprep.subr.mxu0 0.0
    %167 = vmatpush1.msra.mxu0 0.0
    %168 = vmatprep.subr.mxu0 0.0
    %169 = vmatpush1.msra.mxu0 0.0
    %170 = vmatprep.subr.mxu0 0.0
    %171 = vmatpush1.msra.mxu0 0.0
    %172 = vmatprep.mubr.f32.mxu0 0.0
    %173 = vmatmul.mubr.f32.gmra.mrb[0].mxu0 %v81
    %v174 = vpop.f32.mrb[0].mxu0
    %v175 = vadd.f32 %v42, %v174
    %v176 = vpop.f32.mrb[0].mxu0
    %177 = vmatprep.mubr.f32.mxu0 0.0
    %178 = vmatmul.mubr.f32.gmra.mrb[0].mxu0 %v84
    %v179 = vpop.f32.mrb[0].mxu0
    %v180 = vadd.f32 %v47, %v179
    %v181 = vpop.f32.mrb[0].mxu0
    %182 = vmatprep.mubr.f32.mxu0 0.0
    %183 = vmatmul.mubr.f32.gmra.mrb[0].mxu0 %v87
    %v184 = vpop.f32.mrb[0].mxu0
    %v185 = vadd.f32 %v52, %v184
    %v186 = vpop.f32.mrb[0].mxu0
    %187 = vmatprep.mubr.f32.mxu0 0.0
    %188 = vmatmul.mubr.f32.gmra.mrb[0].mxu0 %v90
    %v189 = vpop.f32.mrb[0].mxu0
    %v190 = vadd.f32 %v57, %v189
    %v191 = vpop.f32.mrb[0].mxu0
    %192 = vmatprep.mubr.f32.mxu0 0.0
    %193 = vmatmul.mubr.f32.gmra.mrb[0].mxu0 %v93
    %v194 = vpop.f32.mrb[0].mxu0
    %v195 = vadd.f32 %v62, %v194
    %v196 = vpop.f32.mrb[0].mxu0
    %197 = vmatprep.mubr.f32.mxu0 0.0
    %198 = vmatmul.mubr.f32.gmra.mrb[0].mxu0 %v96
    %v199 = vpop.f32.mrb[0].mxu0
    %v200 = vadd.f32 %v67, %v199
    %v201 = vpop.f32.mrb[0].mxu0
    %202 = vmatprep.mubr.f32.mxu0 0.0
    %203 = vmatmul.mubr.f32.gmra.mrb[0].mxu0 %v99
    %v204 = vpop.f32.mrb[0].mxu0
    %v205 = vadd.f32 %v72, %v204
    %v206 = vpop.f32.mrb[0].mxu0
    %207 = vmatprep.mubr.f32.mxu0 0.0
    %208 = vmatmul.mubr.f32.gmra.mrb[0].mxu0 %v102
    %v209 = vpop.f32.mrb[0].mxu0
    %v210 = vadd.f32 %v77, %v209
    %v211 = vpop.f32.mrb[0].mxu0
    %212 = vdwg.mxu0
    %v213 = vmax.f32 %v175, 0.0
    %v214 = vmax.f32 %v180, 0.0
    %v215 = vmax.f32 %v185, 0.0
    %v216 = vmax.f32 %v190, 0.0
    %v217 = vmax.f32 %v195, 0.0
    %v218 = vmax.f32 %v200, 0.0
    %v219 = vmax.f32 %v205, 0.0
    %v220 = vmax.f32 %v210, 0.0
    %v221 = vld [vmem:[%s3] sm:$0xff]
    %v222 = vld [vmem:[%s4] sm:$0xff]
    %224 = vset.pattern.permute.xlu0 0
    %225 = vperm.xlu0 %224, %v222
    %v226 = vpop.permute.xlu0 %225
    %vm228 = vcmask 523264
    %v230 = vsel %vm228, %v221, 0
    %232 = vmatprep.subr.mxu0 0.0
    %233 = vmatpush1.msra.mxu0 %v213
    %234 = vmatprep.subr.mxu0 0.0
    %235 = vmatpush1.msra.mxu0 %v214
    %236 = vmatprep.subr.mxu0 0.0
    %237 = vmatpush1.msra.mxu0 %v215
    %238 = vmatprep.subr.mxu0 0.0
    %239 = vmatpush1.msra.mxu0 %v216
    %240 = vmatprep.subr.mxu0 0.0
    %241 = vmatpush1.msra.mxu0 %v217
    %242 = vmatprep.subr.mxu0 0.0
    %243 = vmatpush1.msra.mxu0 %v218
    %244 = vmatprep.subr.mxu0 0.0
    %245 = vmatpush1.msra.mxu0 %v219
    %246 = vmatprep.subr.mxu0 0.0
    %247 = vmatpush1.msra.mxu0 %v220
    %248 = vmatprep.subr.mxu0 0.0
    %249 = vmatpush1.msra.mxu0 0.0
    %250 = vmatprep.subr.mxu0 0.0
    %251 = vmatpush1.msra.mxu0 0.0
    %252 = vmatprep.subr.mxu0 0.0
    %253 = vmatpush1.msra.mxu0 0.0
    %254 = vmatprep.subr.mxu0 0.0
    %255 = vmatpush1.msra.mxu0 0.0
    %256 = vmatprep.subr.mxu0 0.0
    %257 = vmatpush1.msra.mxu0 0.0
    %258 = vmatprep.subr.mxu0 0.0
    %259 = vmatpush1.msra.mxu0 0.0
    %260 = vmatprep.subr.mxu0 0.0
    %261 = vmatpush1.msra.mxu0 0.0
    %262 = vmatprep.subr.mxu0 0.0
    %263 = vmatpush1.msra.mxu0 0.0
    %264 = vmatprep.subr.mxu0 0.0
    %265 = vmatpush1.msra.mxu0 0.0
    %266 = vmatprep.subr.mxu0 0.0
    %267 = vmatpush1.msra.mxu0 0.0
    %268 = vmatprep.subr.mxu0 0.0
    %269 = vmatpush1.msra.mxu0 0.0
    %270 = vmatprep.subr.mxu0 0.0
    %271 = vmatpush1.msra.mxu0 0.0
    %272 = vmatprep.subr.mxu0 0.0
    %273 = vmatpush1.msra.mxu0 0.0
    %274 = vmatprep.subr.mxu0 0.0
    %275 = vmatpush1.msra.mxu0 0.0
    %276 = vmatprep.subr.mxu0 0.0
    %277 = vmatpush1.msra.mxu0 0.0
    %278 = vmatprep.subr.mxu0 0.0
    %279 = vmatpush1.msra.mxu0 0.0
    %280 = vmatprep.subr.mxu0 0.0
    %281 = vmatpush1.msra.mxu0 0.0
    %282 = vmatprep.subr.mxu0 0.0
    %283 = vmatpush1.msra.mxu0 0.0
    %284 = vmatprep.subr.mxu0 0.0
    %285 = vmatpush1.msra.mxu0 0.0
    %286 = vmatprep.subr.mxu0 0.0
    %287 = vmatpush1.msra.mxu0 0.0
    %288 = vmatprep.subr.mxu0 0.0
    %289 = vmatpush1.msra.mxu0 0.0
    %290 = vmatprep.subr.mxu0 0.0
    %291 = vmatpush1.msra.mxu0 0.0
    %292 = vmatprep.subr.mxu0 0.0
    %293 = vmatpush1.msra.mxu0 0.0
    %294 = vmatprep.subr.mxu0 0.0
    %295 = vmatpush1.msra.mxu0 0.0
    %296 = vmatprep.mubr.f32.mxu0 0.0
    %297 = vmatmul.mubr.f32.gmra.mrb[0].mxu0 %v230
    %v298 = vpop.f32.mrb[0].mxu0
    %v299 = vadd.f32 %v226, %v298
    %v300 = vpop.f32.mrb[0].mxu0
    %301 = vdwg.mxu0
    %v302 = vlaneseq
    %v303 = vshrl.u32 %v302, 7
    %vm304 = vcmp.lt.s32.totalorder %v303, 4
    %vm305 = vcmp.eq.s32.totalorder %v303, 4
    %v306 = vsel %vm304, %v299, -inf
    %vm307 = vcmask 64512
    %v308 = vsel %vm307, %v306, -inf
    %v309 = vrot.slane %v308, 4
    %v310 = vmax.f32 %v308, %v309
    %v311 = vrot.slane %v310, 2
    %v312 = vmax.f32 %v310, %v311
    %v313 = vrot.slane %v312, 1
    %v314 = vmax.f32 %v312, %v313
    %v315 = vsub.f32 %v306, %v314
    %v316 = vmul.f32 %v315, 1.442695
    %v317 = vpow.pop %v316
    %v318 = vsel %vm307, %v317, 0.0
    %v319 = vrot.slane %v318, 4
    %v320 = vadd.f32 %v318, %v319
    %v321 = vrot.slane %v320, 2
    %v322 = vadd.f32 %v320, %v321
    %v323 = vrot.slane %v322, 1
    %v324 = vadd.f32 %v322, %v323
    %v325 = vrcp.pop %v324
    %v326 = vmul.f32 %v317, %v325
    %v327 = vsel %vm305, %v299, %v326
    %328 = vst.msk [vmem:[#allocation2] sm:$0xff] %vm307, %v327
    // Predicated region
    $region22: #{tpu_custom_call.1} parent=1 // pred_check
      _
    $region23: #{tpu_custom_call.1} parent=1 // pred_check_branch
      %330 = sbr.rel (0) target = $region25
    $region24: #{tpu_custom_call.1} parent=1 // pred_region
      %s332 = ssub.s32 128, 128
      %333 = vsyncadd [#allocation3], %s332
      %s335 = sshll.u32 [#allocation2], 4
      %s336 = int_to_ptr.vmem [resolvable:$true] %s335
      %338 = dma.vmem_to_hbm [thread:$0]  %s336, 128, %s5, [#allocation3]
    $region25: #{tpu_custom_call.1} parent=1 // pred_fallthru
      _
    // Predicated region
    $region26: #{tpu_custom_call.1} parent=1 // pred_check
      _
    $region27: #{tpu_custom_call.1} parent=1 // pred_check_branch
      %340 = sbr.rel (0) target = $region29
    $region28: #{tpu_custom_call.1} parent=1 // pred_region
      %341 = dma.done [#allocation3], 128
    $region29: #{tpu_custom_call.1} parent=1 // pred_fallthru
      _
    %342 = vsyncpa [#allocation3], 1

</llo_original>
